<compile_context>
chip_gen: v7x
topology: tpu7x:2x2x1
jax: 0.10.0
libtpu: 0.0.40
codegen_flags: <defaults>
</compile_context>

<pallas_src>
import functools

import jax
import jax.numpy as jnp
from jax import lax
from jax.experimental import pallas as pl
from jax.experimental.pallas import tpu as pltpu

LANE = 128      # TPU lane width (last-dim granularity)
SUBLANE = 8     # TPU sublane granularity for f32 (second-to-last dim)


def _round_up(x, m):
    return (x + m - 1) // m * m


def _rnn_recurrence_kernel(h0_ref, p_ref, whh_ref, h_all_ref, h_carry, *, tb):
    """One grid step == TB RNN time steps (serial recurrence only).

    h0_ref    : (b_pad, h_pad)      initial hidden (resident; read at block 0)
    p_ref     : (tb, b_pad, h_pad)  pre-activations x_t @ W_ih^T + (b_ih + b_hh)
    whh_ref   : (h_pad, h_pad)      W_hh^T (resident in VMEM across the grid)
    h_all_ref : (tb, b_pad, h_pad)  per-step hidden states (lane-dense stores)
    h_carry   : (b_pad, h_pad) f32  hidden state carried across steps & blocks
    """
    @pl.when(pl.program_id(0) == 0)
    def _():
        h_carry[...] = h0_ref[...]

    whh = whh_ref[...]                         # load resident weight once/block

    def step(s, carry):
        pre = jnp.dot(h_carry[...], whh,
                      preferred_element_type=jnp.float32) + p_ref[s]
        h_new = jnp.tanh(pre)                  # EUP, f32
        h_carry[...] = h_new                   # carry for next step / next block
        h_all_ref[s] = h_new                   # per-step hidden (128-lane dense)
        return carry

    # Short fixed trip count -> fully unrolled for LLO scheduler visibility.
    lax.fori_loop(0, tb, step, 0, unroll=True)


def init_params(key, input_size, hidden_size, output_size, dtype=jnp.float32):
    """Deterministic init matching nn.Linear shapes (W: (out, in), b: (out,))."""
    ks = jax.random.split(key, 6)

    def lin(kw, kb, fan_in, fan_out):
        bound = 1.0 / jnp.sqrt(fan_in)
        w = jax.random.uniform(kw, (fan_out, fan_in), dtype, -bound, bound)
        b = jax.random.uniform(kb, (fan_out,), dtype, -bound, bound)
        return w, b

    w_ih, b_ih = lin(ks[0], ks[1], input_size, hidden_size)
    w_hh, b_hh = lin(ks[2], ks[3], hidden_size, hidden_size)
    w_out, b_out = lin(ks[4], ks[5], hidden_size, output_size)
    return (w_ih, b_ih, w_hh, b_hh, w_out, b_out)


def pack_params(params, input_size, hidden_size, output_size):
    """One-time packing.

    Recurrent weight W_hh is pre-transposed and lane-padded (it lives in VMEM
    inside the kernel).  The input-projection weight is pre-transposed with its
    OUTPUT dim lane-padded so the hoisted XLA GEMM directly produces the
    kernel's padded hidden layout; b_ih + b_hh are pre-summed into it.  The
    output projection stays in its natural shape (it runs as a parallel XLA
    GEMM after the kernel).
    """
    w_ih, b_ih, w_hh, b_hh, w_out, b_out = params
    h_pad = _round_up(hidden_size, LANE)

    w_in = jnp.zeros((input_size, h_pad), jnp.float32)
    w_in = w_in.at[:, :hidden_size].set(w_ih.T.astype(jnp.float32))
    b_in = jnp.zeros((h_pad,), jnp.float32).at[:hidden_size].set(
        (b_ih + b_hh).astype(jnp.float32))

    whh = jnp.zeros((h_pad, h_pad), jnp.float32)
    whh = whh.at[:hidden_size, :hidden_size].set(w_hh.T.astype(jnp.float32))

    return (w_in, b_in, whh, w_out.astype(jnp.float32), b_out.astype(jnp.float32))


@functools.partial(jax.jit, static_argnames=("time_block",))
def rnn_forward_sequence(x_seq, h0, packed, *, time_block=32):
    """Run T RNN-cell steps; only the recurrence runs inside the Pallas kernel.

    x_seq : (T, B, input_size)   h0 : (B, hidden_size)
    Returns (outputs (T, B, output_size), hidden_final (B, hidden_size)).
    """
    w_in, b_in, whh, w_out, b_out = packed
    T, B, _ = x_seq.shape
    hidden_size = w_out.shape[1]
    h_pad = whh.shape[0]
    b_pad = _round_up(max(B, SUBLANE), SUBLANE)

    tb = min(time_block, T)
    n_blocks = pl.cdiv(T, tb)
    t_pad = n_blocks * tb

    # ---- parallel over time (hoisted): input projection + summed bias -------
    p = jnp.einsum("tbi,ih->tbh", x_seq.astype(jnp.float32), w_in,
                   preferred_element_type=jnp.float32) + b_in
    # Pad batch to sublane granularity and time to the block size.  Padded rows
    # and padded trailing steps are exact zeros (bias is inside P), so padded
    # hidden rows stay exactly zero through the recurrence.
    p_pad = jnp.zeros((t_pad, b_pad, h_pad), jnp.float32).at[:T, :B, :].set(p)
    h0_pad = jnp.zeros((b_pad, h_pad), jnp.float32).at[:B, :hidden_size].set(
        h0.astype(jnp.float32))

    kernel = functools.partial(_rnn_recurrence_kernel, tb=tb)

    flops = t_pad * 2 * b_pad * h_pad * h_pad
    bytes_accessed = 4 * (p_pad.size + h0_pad.size + whh.size
                          + t_pad * b_pad * h_pad)

    h_all = pl.pallas_call(
        kernel,
        out_shape=jax.ShapeDtypeStruct((t_pad, b_pad, h_pad), jnp.float32),
        grid_spec=pltpu.PrefetchScalarGridSpec(
            num_scalar_prefetch=0,
            grid=(n_blocks,),
            in_specs=[
                pl.BlockSpec((b_pad, h_pad), lambda i: (0, 0)),         # h0 (resident)
                pl.BlockSpec((tb, b_pad, h_pad), lambda i: (i, 0, 0)),  # P time-block
                pl.BlockSpec((h_pad, h_pad), lambda i: (0, 0)),         # W_hh^T (resident)
            ],
            out_specs=pl.BlockSpec((tb, b_pad, h_pad), lambda i: (i, 0, 0)),
            scratch_shapes=[
                pltpu.VMEM((b_pad, h_pad), jnp.float32),                # hidden carry
            ],
        ),
        compiler_params=pltpu.CompilerParams(
            dimension_semantics=("arbitrary",),   # recurrence is serial in time
        ),
        cost_estimate=pl.CostEstimate(
            flops=flops,
            transcendentals=t_pad * b_pad * h_pad,
            bytes_accessed=bytes_accessed,
        ),
    )(h0_pad, p_pad, whh)

    h_seq = h_all[:T, :B, :hidden_size]

    # ---- parallel over time (hoisted): output projection ---------------------
    outs = jnp.einsum("tbh,oh->tbo", h_seq, w_out,
                      preferred_element_type=jnp.float32) + b_out
    h_final = h_seq[T - 1]
    return outs.astype(x_seq.dtype), h_final.astype(x_seq.dtype)


def rnn_forward(x, h, packed):
    """Single cell step, exactly RNNModel.forward(input, hidden)."""
    outs, h_new = rnn_forward_sequence(x[None], h, packed, time_block=1)
    return outs[0], h_new


def reference_forward_sequence(x_seq, h0, params):
    w_ih, b_ih, w_hh, b_hh, w_out, b_out = params

    def step(h, x):
        h_new = jnp.tanh(x @ w_ih.T + b_ih + h @ w_hh.T + b_hh)
        out = h_new @ w_out.T + b_out
        return h_new, out

    h_final, outs = jax.lax.scan(step, h0, x_seq)
    return outs, h_final


if __name__ == "__main__":
    input_size = 16
    hidden_size = 35   # matches the module-level constant in simpleRNN_uniStyle.py
    output_size = 10
    batch = 2
    seq_len = 8

    key = jax.random.PRNGKey(0)
    k_x, k_p = jax.random.split(key)

    x_seq = jax.random.normal(k_x, (seq_len, batch, input_size), jnp.float32)
    h0 = jnp.zeros((batch, hidden_size), jnp.float32)   # init_hidden, broadcast over batch
    params = init_params(k_p, input_size, hidden_size, output_size)
    packed = pack_params(params, input_size, hidden_size, output_size)  # once, not per call

    # Full sequence: serial recurrence in one pallas_call, projections hoisted.
    outs, h_final = rnn_forward_sequence(x_seq, h0, packed)
    outs = jax.block_until_ready(outs)
    h_final = jax.block_until_ready(h_final)

    outs_ref, h_final_ref = reference_forward_sequence(x_seq, h0, params)
    assert jnp.allclose(outs, outs_ref, atol=1e-5, rtol=1e-5), \
        float(jnp.max(jnp.abs(outs - outs_ref)))
    assert jnp.allclose(h_final, h_final_ref, atol=1e-5, rtol=1e-5)

    # Single step, matching RNNModel.forward(input, hidden) exactly.
    out1, h1 = rnn_forward(x_seq[0], h0, packed)
    out1 = jax.block_until_ready(out1)
    out1_ref, h1_ref = reference_forward_sequence(x_seq[:1], h0, params)
    assert jnp.allclose(out1, out1_ref[0], atol=1e-5, rtol=1e-5)
    assert jnp.allclose(h1, h1_ref, atol=1e-5, rtol=1e-5)

    print("KERNEL_OK")
</pallas_src>

<mosaic_0001>
module attributes {stable_mosaic.version = 11 : i64} {
  func.func @_rnn_recurrence_kernel(%arg0: i32, %arg1: memref<8x128xf32, #tpu.memory_space<vmem>>, %arg2: memref<8x8x128xf32, #tpu.memory_space<vmem>>, %arg3: memref<128x128xf32, #tpu.memory_space<vmem>>, %arg4: memref<8x8x128xf32, #tpu.memory_space<vmem>>, %arg5: memref<8x128xf32, #tpu.memory_space<vmem>>) attributes {dimension_semantics = [#tpu.dimension_semantics<arbitrary>], iteration_bounds = array<i64: 1>, scalar_prefetch = 0 : i64, scratch_operands = 1 : i64, tpu.core_type = #tpu.core_type<tc>, window_params = [{pipeline_mode = #tpu.pipeline_mode<synchronous>, transform_indices = @transform_0, window_bounds = array<i64: 8, 128>}, {transform_indices = @transform_1, window_bounds = array<i64: 8, 8, 128>}, {pipeline_mode = #tpu.pipeline_mode<synchronous>, transform_indices = @transform_2, window_bounds = array<i64: 128, 128>}, {transform_indices = @transform_3, window_bounds = array<i64: 8, 8, 128>}]} {
    %c0_i32 = arith.constant 0 : i32
    %0 = arith.cmpi eq, %arg0, %c0_i32 : i32
    %1 = arith.extui %0 : i1 to i32
    %c0_i32_0 = arith.constant 0 : i32
    %2 = arith.cmpi ne, %1, %c0_i32_0 : i32
    scf.if %2 {
      %c0_74 = arith.constant 0 : index
      %c0_75 = arith.constant 0 : index
      %100 = vector.load %arg1[%c0_74, %c0_75] : memref<8x128xf32, #tpu.memory_space<vmem>>, vector<8x128xf32>
      %c0_76 = arith.constant 0 : index
      %c0_77 = arith.constant 0 : index
      %101 = vector.load %arg5[%c0_76, %c0_77] : memref<8x128xf32, #tpu.memory_space<vmem>>, vector<8x128xf32>
      tpu.vector_store %arg5[%c0_76, %c0_77], %100 {strides = array<i32>} : memref<8x128xf32, #tpu.memory_space<vmem>>, vector<8x128xf32>,
    } else {
    }
    %c0 = arith.constant 0 : index
    %c0_1 = arith.constant 0 : index
    %3 = vector.load %arg3[%c0, %c0_1] : memref<128x128xf32, #tpu.memory_space<vmem>>, vector<128x128xf32>
    %c0_i32_2 = arith.constant 0 : i32
    %c0_3 = arith.constant 0 : index
    %c0_4 = arith.constant 0 : index
    %4 = vector.load %arg5[%c0_3, %c0_4] : memref<8x128xf32, #tpu.memory_space<vmem>>, vector<8x128xf32>
    %cst = arith.constant dense<0.000000e+00> : vector<8x128xf32>
    %5 = tpu.matmul %4, %3, %cst {dimension_numbers = #tpu.dot_dimension_numbers<[1], [0], [0], [1], [0, 0, 1, 1], [], []>} : vector<8x128xf32>, vector<128x128xf32>, vector<8x128xf32> -> vector<8x128xf32>
    %6 = arith.index_cast %c0_i32_2 : i32 to index
    %c0_5 = arith.constant 0 : index
    %c0_6 = arith.constant 0 : index
    %7 = vector.load %arg2[%6, %c0_5, %c0_6] : memref<8x8x128xf32, #tpu.memory_space<vmem>>, vector<1x8x128xf32>
    %8 = vector.shape_cast %7 : vector<1x8x128xf32> to vector<8x128xf32>
    %9 = arith.addf %5, %8 : vector<8x128xf32>
    %10 = math.tanh %9 : vector<8x128xf32>
    %c0_7 = arith.constant 0 : index
    %c0_8 = arith.constant 0 : index
    %11 = vector.load %arg5[%c0_7, %c0_8] : memref<8x128xf32, #tpu.memory_space<vmem>>, vector<8x128xf32>
    tpu.vector_store %arg5[%c0_7, %c0_8], %10 {strides = array<i32>} : memref<8x128xf32, #tpu.memory_space<vmem>>, vector<8x128xf32>,
    %12 = arith.index_cast %c0_i32_2 : i32 to index
    %c0_9 = arith.constant 0 : index
    %c0_10 = arith.constant 0 : index
    %13 = vector.load %arg4[%12, %c0_9, %c0_10] : memref<8x8x128xf32, #tpu.memory_space<vmem>>, vector<1x8x128xf32>
    %14 = vector.shape_cast %13 : vector<1x8x128xf32> to vector<8x128xf32>
    %15 = vector.shape_cast %10 : vector<8x128xf32> to vector<1x8x128xf32>
    tpu.vector_store %arg4[%12, %c0_9, %c0_10], %15 {strides = array<i32>} : memref<8x8x128xf32, #tpu.memory_space<vmem>>, vector<1x8x128xf32>,
    %c1_i32 = arith.constant 1 : i32
    %c0_11 = arith.constant 0 : index
    %c0_12 = arith.constant 0 : index
    %16 = vector.load %arg5[%c0_11, %c0_12] : memref<8x128xf32, #tpu.memory_space<vmem>>, vector<8x128xf32>
    %cst_13 = arith.constant dense<0.000000e+00> : vector<8x128xf32>
    %17 = tpu.matmul %16, %3, %cst_13 {dimension_numbers = #tpu.dot_dimension_numbers<[1], [0], [0], [1], [0, 0, 1, 1], [], []>} : vector<8x128xf32>, vector<128x128xf32>, vector<8x128xf32> -> vector<8x128xf32>
    %18 = arith.index_cast %c1_i32 : i32 to index
    %c0_14 = arith.constant 0 : index
    %c0_15 = arith.constant 0 : index
    %19 = vector.load %arg2[%18, %c0_14, %c0_15] : memref<8x8x128xf32, #tpu.memory_space<vmem>>, vector<1x8x128xf32>
    %20 = vector.shape_cast %19 : vector<1x8x128xf32> to vector<8x128xf32>
    %21 = arith.addf %17, %20 : vector<8x128xf32>
    %22 = math.tanh %21 : vector<8x128xf32>
    %c0_16 = arith.constant 0 : index
    %c0_17 = arith.constant 0 : index
    %23 = vector.load %arg5[%c0_16, %c0_17] : memref<8x128xf32, #tpu.memory_space<vmem>>, vector<8x128xf32>
    tpu.vector_store %arg5[%c0_16, %c0_17], %22 {strides = array<i32>} : memref<8x128xf32, #tpu.memory_space<vmem>>, vector<8x128xf32>,
    %24 = arith.index_cast %c1_i32 : i32 to index
    %c0_18 = arith.constant 0 : index
    %c0_19 = arith.constant 0 : index
    %25 = vector.load %arg4[%24, %c0_18, %c0_19] : memref<8x8x128xf32, #tpu.memory_space<vmem>>, vector<1x8x128xf32>
    %26 = vector.shape_cast %25 : vector<1x8x128xf32> to vector<8x128xf32>
    %27 = vector.shape_cast %22 : vector<8x128xf32> to vector<1x8x128xf32>
    tpu.vector_store %arg4[%24, %c0_18, %c0_19], %27 {strides = array<i32>} : memref<8x8x128xf32, #tpu.memory_space<vmem>>, vector<1x8x128xf32>,
    %c2_i32 = arith.constant 2 : i32
    %c0_20 = arith.constant 0 : index
    %c0_21 = arith.constant 0 : index
    %28 = vector.load %arg5[%c0_20, %c0_21] : memref<8x128xf32, #tpu.memory_space<vmem>>, vector<8x128xf32>
    %cst_22 = arith.constant dense<0.000000e+00> : vector<8x128xf32>
    %29 = tpu.matmul %28, %3, %cst_22 {dimension_numbers = #tpu.dot_dimension_numbers<[1], [0], [0], [1], [0, 0, 1, 1], [], []>} : vector<8x128xf32>, vector<128x128xf32>, vector<8x128xf32> -> vector<8x128xf32>
    %30 = arith.index_cast %c2_i32 : i32 to index
    %c0_23 = arith.constant 0 : index
    %c0_24 = arith.constant 0 : index
    %31 = vector.load %arg2[%30, %c0_23, %c0_24] : memref<8x8x128xf32, #tpu.memory_space<vmem>>, vector<1x8x128xf32>
    %32 = vector.shape_cast %31 : vector<1x8x128xf32> to vector<8x128xf32>
    %33 = arith.addf %29, %32 : vector<8x128xf32>
    %34 = math.tanh %33 : vector<8x128xf32>
    %c0_25 = arith.constant 0 : index
    %c0_26 = arith.constant 0 : index
    %35 = vector.load %arg5[%c0_25, %c0_26] : memref<8x128xf32, #tpu.memory_space<vmem>>, vector<8x128xf32>
    tpu.vector_store %arg5[%c0_25, %c0_26], %34 {strides = array<i32>} : memref<8x128xf32, #tpu.memory_space<vmem>>, vector<8x128xf32>,
    %36 = arith.index_cast %c2_i32 : i32 to index
    %c0_27 = arith.constant 0 : index
    %c0_28 = arith.constant 0 : index
    %37 = vector.load %arg4[%36, %c0_27, %c0_28] : memref<8x8x128xf32, #tpu.memory_space<vmem>>, vector<1x8x128xf32>
    %38 = vector.shape_cast %37 : vector<1x8x128xf32> to vector<8x128xf32>
    %39 = vector.shape_cast %34 : vector<8x128xf32> to vector<1x8x128xf32>
    tpu.vector_store %arg4[%36, %c0_27, %c0_28], %39 {strides = array<i32>} : memref<8x8x128xf32, #tpu.memory_space<vmem>>, vector<1x8x128xf32>,
    %c3_i32 = arith.constant 3 : i32
    %c0_29 = arith.constant 0 : index
    %c0_30 = arith.constant 0 : index
    %40 = vector.load %arg5[%c0_29, %c0_30] : memref<8x128xf32, #tpu.memory_space<vmem>>, vector<8x128xf32>
    %cst_31 = arith.constant dense<0.000000e+00> : vector<8x128xf32>
    %41 = tpu.matmul %40, %3, %cst_31 {dimension_numbers = #tpu.dot_dimension_numbers<[1], [0], [0], [1], [0, 0, 1, 1], [], []>} : vector<8x128xf32>, vector<128x128xf32>, vector<8x128xf32> -> vector<8x128xf32>
    %42 = arith.index_cast %c3_i32 : i32 to index
    %c0_32 = arith.constant 0 : index
    %c0_33 = arith.constant 0 : index
    %43 = vector.load %arg2[%42, %c0_32, %c0_33] : memref<8x8x128xf32, #tpu.memory_space<vmem>>, vector<1x8x128xf32>
    %44 = vector.shape_cast %43 : vector<1x8x128xf32> to vector<8x128xf32>
    %45 = arith.addf %41, %44 : vector<8x128xf32>
    %46 = math.tanh %45 : vector<8x128xf32>
    %c0_34 = arith.constant 0 : index
    %c0_35 = arith.constant 0 : index
    %47 = vector.load %arg5[%c0_34, %c0_35] : memref<8x128xf32, #tpu.memory_space<vmem>>, vector<8x128xf32>
    tpu.vector_store %arg5[%c0_34, %c0_35], %46 {strides = array<i32>} : memref<8x128xf32, #tpu.memory_space<vmem>>, vector<8x128xf32>,
    %48 = arith.index_cast %c3_i32 : i32 to index
    %c0_36 = arith.constant 0 : index
    %c0_37 = arith.constant 0 : index
    %49 = vector.load %arg4[%48, %c0_36, %c0_37] : memref<8x8x128xf32, #tpu.memory_space<vmem>>, vector<1x8x128xf32>
    %50 = vector.shape_cast %49 : vector<1x8x128xf32> to vector<8x128xf32>
    %51 = vector.shape_cast %46 : vector<8x128xf32> to vector<1x8x128xf32>
    tpu.vector_store %arg4[%48, %c0_36, %c0_37], %51 {strides = array<i32>} : memref<8x8x128xf32, #tpu.memory_space<vmem>>, vector<1x8x128xf32>,
    %c4_i32 = arith.constant 4 : i32
    %c0_38 = arith.constant 0 : index
    %c0_39 = arith.constant 0 : index
    %52 = vector.load %arg5[%c0_38, %c0_39] : memref<8x128xf32, #tpu.memory_space<vmem>>, vector<8x128xf32>
    %cst_40 = arith.constant dense<0.000000e+00> : vector<8x128xf32>
    %53 = tpu.matmul %52, %3, %cst_40 {dimension_numbers = #tpu.dot_dimension_numbers<[1], [0], [0], [1], [0, 0, 1, 1], [], []>} : vector<8x128xf32>, vector<128x128xf32>, vector<8x128xf32> -> vector<8x128xf32>
    %54 = arith.index_cast %c4_i32 : i32 to index
    %c0_41 = arith.constant 0 : index
    %c0_42 = arith.constant 0 : index
    %55 = vector.load %arg2[%54, %c0_41, %c0_42] : memref<8x8x128xf32, #tpu.memory_space<vmem>>, vector<1x8x128xf32>
    %56 = vector.shape_cast %55 : vector<1x8x128xf32> to vector<8x128xf32>
    %57 = arith.addf %53, %56 : vector<8x128xf32>
    %58 = math.tanh %57 : vector<8x128xf32>
    %c0_43 = arith.constant 0 : index
    %c0_44 = arith.constant 0 : index
    %59 = vector.load %arg5[%c0_43, %c0_44] : memref<8x128xf32, #tpu.memory_space<vmem>>, vector<8x128xf32>
    tpu.vector_store %arg5[%c0_43, %c0_44], %58 {strides = array<i32>} : memref<8x128xf32, #tpu.memory_space<vmem>>, vector<8x128xf32>,
    %60 = arith.index_cast %c4_i32 : i32 to index
    %c0_45 = arith.constant 0 : index
    %c0_46 = arith.constant 0 : index
    %61 = vector.load %arg4[%60, %c0_45, %c0_46] : memref<8x8x128xf32, #tpu.memory_space<vmem>>, vector<1x8x128xf32>
    %62 = vector.shape_cast %61 : vector<1x8x128xf32> to vector<8x128xf32>
    %63 = vector.shape_cast %58 : vector<8x128xf32> to vector<1x8x128xf32>
    tpu.vector_store %arg4[%60, %c0_45, %c0_46], %63 {strides = array<i32>} : memref<8x8x128xf32, #tpu.memory_space<vmem>>, vector<1x8x128xf32>,
    %c5_i32 = arith.constant 5 : i32
    %c0_47 = arith.constant 0 : index
    %c0_48 = arith.constant 0 : index
    %64 = vector.load %arg5[%c0_47, %c0_48] : memref<8x128xf32, #tpu.memory_space<vmem>>, vector<8x128xf32>
    %cst_49 = arith.constant dense<0.000000e+00> : vector<8x128xf32>
    %65 = tpu.matmul %64, %3, %cst_49 {dimension_numbers = #tpu.dot_dimension_numbers<[1], [0], [0], [1], [0, 0, 1, 1], [], []>} : vector<8x128xf32>, vector<128x128xf32>, vector<8x128xf32> -> vector<8x128xf32>
    %66 = arith.index_cast %c5_i32 : i32 to index
    %c0_50 = arith.constant 0 : index
    %c0_51 = arith.constant 0 : index
    %67 = vector.load %arg2[%66, %c0_50, %c0_51] : memref<8x8x128xf32, #tpu.memory_space<vmem>>, vector<1x8x128xf32>
    %68 = vector.shape_cast %67 : vector<1x8x128xf32> to vector<8x128xf32>
    %69 = arith.addf %65, %68 : vector<8x128xf32>
    %70 = math.tanh %69 : vector<8x128xf32>
    %c0_52 = arith.constant 0 : index
    %c0_53 = arith.constant 0 : index
    %71 = vector.load %arg5[%c0_52, %c0_53] : memref<8x128xf32, #tpu.memory_space<vmem>>, vector<8x128xf32>
    tpu.vector_store %arg5[%c0_52, %c0_53], %70 {strides = array<i32>} : memref<8x128xf32, #tpu.memory_space<vmem>>, vector<8x128xf32>,
    %72 = arith.index_cast %c5_i32 : i32 to index
    %c0_54 = arith.constant 0 : index
    %c0_55 = arith.constant 0 : index
    %73 = vector.load %arg4[%72, %c0_54, %c0_55] : memref<8x8x128xf32, #tpu.memory_space<vmem>>, vector<1x8x128xf32>
    %74 = vector.shape_cast %73 : vector<1x8x128xf32> to vector<8x128xf32>
    %75 = vector.shape_cast %70 : vector<8x128xf32> to vector<1x8x128xf32>
    tpu.vector_store %arg4[%72, %c0_54, %c0_55], %75 {strides = array<i32>} : memref<8x8x128xf32, #tpu.memory_space<vmem>>, vector<1x8x128xf32>,
    %c6_i32 = arith.constant 6 : i32
    %c0_56 = arith.constant 0 : index
    %c0_57 = arith.constant 0 : index
    %76 = vector.load %arg5[%c0_56, %c0_57] : memref<8x128xf32, #tpu.memory_space<vmem>>, vector<8x128xf32>
    %cst_58 = arith.constant dense<0.000000e+00> : vector<8x128xf32>
    %77 = tpu.matmul %76, %3, %cst_58 {dimension_numbers = #tpu.dot_dimension_numbers<[1], [0], [0], [1], [0, 0, 1, 1], [], []>} : vector<8x128xf32>, vector<128x128xf32>, vector<8x128xf32> -> vector<8x128xf32>
    %78 = arith.index_cast %c6_i32 : i32 to index
    %c0_59 = arith.constant 0 : index
    %c0_60 = arith.constant 0 : index
    %79 = vector.load %arg2[%78, %c0_59, %c0_60] : memref<8x8x128xf32, #tpu.memory_space<vmem>>, vector<1x8x128xf32>
    %80 = vector.shape_cast %79 : vector<1x8x128xf32> to vector<8x128xf32>
    %81 = arith.addf %77, %80 : vector<8x128xf32>
    %82 = math.tanh %81 : vector<8x128xf32>
    %c0_61 = arith.constant 0 : index
    %c0_62 = arith.constant 0 : index
    %83 = vector.load %arg5[%c0_61, %c0_62] : memref<8x128xf32, #tpu.memory_space<vmem>>, vector<8x128xf32>
    tpu.vector_store %arg5[%c0_61, %c0_62], %82 {strides = array<i32>} : memref<8x128xf32, #tpu.memory_space<vmem>>, vector<8x128xf32>,
    %84 = arith.index_cast %c6_i32 : i32 to index
    %c0_63 = arith.constant 0 : index
    %c0_64 = arith.constant 0 : index
    %85 = vector.load %arg4[%84, %c0_63, %c0_64] : memref<8x8x128xf32, #tpu.memory_space<vmem>>, vector<1x8x128xf32>
    %86 = vector.shape_cast %85 : vector<1x8x128xf32> to vector<8x128xf32>
    %87 = vector.shape_cast %82 : vector<8x128xf32> to vector<1x8x128xf32>
    tpu.vector_store %arg4[%84, %c0_63, %c0_64], %87 {strides = array<i32>} : memref<8x8x128xf32, #tpu.memory_space<vmem>>, vector<1x8x128xf32>,
    %c7_i32 = arith.constant 7 : i32
    %c0_65 = arith.constant 0 : index
    %c0_66 = arith.constant 0 : index
    %88 = vector.load %arg5[%c0_65, %c0_66] : memref<8x128xf32, #tpu.memory_space<vmem>>, vector<8x128xf32>
    %cst_67 = arith.constant dense<0.000000e+00> : vector<8x128xf32>
    %89 = tpu.matmul %88, %3, %cst_67 {dimension_numbers = #tpu.dot_dimension_numbers<[1], [0], [0], [1], [0, 0, 1, 1], [], []>} : vector<8x128xf32>, vector<128x128xf32>, vector<8x128xf32> -> vector<8x128xf32>
    %90 = arith.index_cast %c7_i32 : i32 to index
    %c0_68 = arith.constant 0 : index
    %c0_69 = arith.constant 0 : index
    %91 = vector.load %arg2[%90, %c0_68, %c0_69] : memref<8x8x128xf32, #tpu.memory_space<vmem>>, vector<1x8x128xf32>
    %92 = vector.shape_cast %91 : vector<1x8x128xf32> to vector<8x128xf32>
    %93 = arith.addf %89, %92 : vector<8x128xf32>
    %94 = math.tanh %93 : vector<8x128xf32>
    %c0_70 = arith.constant 0 : index
    %c0_71 = arith.constant 0 : index
    %95 = vector.load %arg5[%c0_70, %c0_71] : memref<8x128xf32, #tpu.memory_space<vmem>>, vector<8x128xf32>
    tpu.vector_store %arg5[%c0_70, %c0_71], %94 {strides = array<i32>} : memref<8x128xf32, #tpu.memory_space<vmem>>, vector<8x128xf32>,
    %96 = arith.index_cast %c7_i32 : i32 to index
    %c0_72 = arith.constant 0 : index
    %c0_73 = arith.constant 0 : index
    %97 = vector.load %arg4[%96, %c0_72, %c0_73] : memref<8x8x128xf32, #tpu.memory_space<vmem>>, vector<1x8x128xf32>
    %98 = vector.shape_cast %97 : vector<1x8x128xf32> to vector<8x128xf32>
    %99 = vector.shape_cast %94 : vector<8x128xf32> to vector<1x8x128xf32>
    tpu.vector_store %arg4[%96, %c0_72, %c0_73], %99 {strides = array<i32>} : memref<8x8x128xf32, #tpu.memory_space<vmem>>, vector<1x8x128xf32>,
    %c8_i32 = arith.constant 8 : i32
    return
  }
  func.func @transform_0(%arg0: i32) -> (i32, i32) {
    %c0_i32 = arith.constant 0 : i32
    %c0_i32_0 = arith.constant 0 : i32
    %c0_i32_1 = arith.constant 0 : i32
    return %c0_i32, %c0_i32_0 : i32, i32
  }
  func.func @transform_1(%arg0: i32) -> (i32, i32, i32) {
    %c0_i32 = arith.constant 0 : i32
    %c0_i32_0 = arith.constant 0 : i32
    %c0_i32_1 = arith.constant 0 : i32
    return %arg0, %c0_i32, %c0_i32_0 : i32, i32, i32
  }
  func.func @transform_2(%arg0: i32) -> (i32, i32) {
    %c0_i32 = arith.constant 0 : i32
    %c0_i32_0 = arith.constant 0 : i32
    %c0_i32_1 = arith.constant 0 : i32
    return %c0_i32, %c0_i32_0 : i32, i32
  }
  func.func @transform_3(%arg0: i32) -> (i32, i32, i32) {
    %c0_i32 = arith.constant 0 : i32
    %c0_i32_0 = arith.constant 0 : i32
    %c0_i32_1 = arith.constant 0 : i32
    return %arg0, %c0_i32, %c0_i32_0 : i32, i32, i32
  }
}

</mosaic_0001>

<llo_original>
// kernel: rnn_forward_sequence.1
$region0: #{rnn_forward_sequence.1}
  #allocation0 [shape = 'u32[]', space=smem, size = 0x4, offset = 0x4, fixed_abs, tag = 'smem constant byte address 0x4 - core index']
  #allocation1 [shape = 'u32[144,128]{1,0:T(1,128)}', space=vmem, size = 0x12000, scoped, tag = 'internal scratch']
  #allocation2 [shape = 'f32[8,128]{1,0:T(8,128)}', space=vmem, size = 0x1000, scoped, tag = 'scratch operand']
  %s0 = inlined_call_operand.vmem [shape: f32[8,128], index: 0, kind: input, shape index: {}]
  %s1 = inlined_call_operand.vmem [shape: f32[8,8,128], index: 1, kind: input, shape index: {}]
  %s2 = inlined_call_operand.vmem [shape: f32[128,128], index: 2, kind: input, shape index: {}]
  %s3 = inlined_call_operand.vmem [shape: f32[8,8,128], index: 3, kind: output, shape index: {}]
  %s4 = sld [smem:[#allocation0]]
  $region26: #{rnn_forward_sequence.1} parent=0
    _
  %s6 = ssub.s32 1, %s4
  %s7 = scalar_select 0, %s6, %s4
  // Predicated region
  $region2: #{rnn_forward_sequence.1} parent=0 // pred_check
    _
  $region3: #{rnn_forward_sequence.1} parent=0 // pred_check_branch
    %9 = sbr.rel (0) target = $region5
  $region4: #{rnn_forward_sequence.1} parent=0 // pred_region
    _
  $region5: #{rnn_forward_sequence.1} parent=0 // pred_fallthru
    _
  // Predicated region
  $region6: #{rnn_forward_sequence.1} parent=0 // pred_check
    _
  $region7: #{rnn_forward_sequence.1} parent=0 // pred_check_branch
    %11 = sbr.rel (0) target = $region9
  $region8: #{rnn_forward_sequence.1} parent=0 // pred_region
    _
  $region9: #{rnn_forward_sequence.1} parent=0 // pred_fallthru
    _
  // Predicated region
  $region10: #{rnn_forward_sequence.1} parent=0 // pred_check
    _
  $region11: #{rnn_forward_sequence.1} parent=0 // pred_check_branch
    %13 = sbr.rel (0) target = $region13
  $region12: #{rnn_forward_sequence.1} parent=0 // pred_region
    _
  $region13: #{rnn_forward_sequence.1} parent=0 // pred_fallthru
    _
  %p14 = scmp.eq.s32.totalorder 0, 0
  // Predicated region
  $region14: #{rnn_forward_sequence.1} parent=0 // pred_check
    %p15 = pneg %p14
  $region15: #{rnn_forward_sequence.1} parent=0 // pred_check_branch
    %17 = sbr.rel (%p15) target = $region17
  $region16: #{rnn_forward_sequence.1} parent=0 // pred_region
    %v18 = vld [vmem:[%s0] sm:$0xff]
    %19 = vst [vmem:[#allocation2] sm:$0xff] %v18
  $region17: #{rnn_forward_sequence.1} parent=0 // pred_fallthru
    _
  %v20 = vld [vmem:[%s2] sm:$0xff]
  %v21 = vld [vmem:[%s2 + $0x8] sm:$0xff]
  %v22 = vld [vmem:[%s2 + $0x10] sm:$0xff]
  %v23 = vld [vmem:[%s2 + $0x18] sm:$0xff]
  %v24 = vld [vmem:[%s2 + $0x20] sm:$0xff]
  %v25 = vld [vmem:[%s2 + $0x28] sm:$0xff]
  %v26 = vld [vmem:[%s2 + $0x30] sm:$0xff]
  %v27 = vld [vmem:[%s2 + $0x38] sm:$0xff]
  %v28 = vld [vmem:[%s2 + $0x40] sm:$0xff]
  %v29 = vld [vmem:[%s2 + $0x48] sm:$0xff]
  %v30 = vld [vmem:[%s2 + $0x50] sm:$0xff]
  %v31 = vld [vmem:[%s2 + $0x58] sm:$0xff]
  %v32 = vld [vmem:[%s2 + $0x60] sm:$0xff]
  %v33 = vld [vmem:[%s2 + $0x68] sm:$0xff]
  %v34 = vld [vmem:[%s2 + $0x70] sm:$0xff]
  %v35 = vld [vmem:[%s2 + $0x78] sm:$0xff]
  %v36 = vld [vmem:[#allocation2] sm:$0xff]
  %v37 = vld [vmem:[%s1] sm:$0xff]
  %38 = vmatprep.subr.mxu0 0.0
  %39 = vmatpush1.msra.mxu0 %v20
  %40 = vmatprep.subr.mxu0 0.0
  %41 = vmatpush1.msra.mxu0 %v21
  %42 = vmatprep.subr.mxu0 0.0
  %43 = vmatpush1.msra.mxu0 %v22
  %44 = vmatprep.subr.mxu0 0.0
  %45 = vmatpush1.msra.mxu0 %v23
  %46 = vmatprep.subr.mxu0 0.0
  %47 = vmatpush1.msra.mxu0 %v24
  %48 = vmatprep.subr.mxu0 0.0
  %49 = vmatpush1.msra.mxu0 %v25
  %50 = vmatprep.subr.mxu0 0.0
  %51 = vmatpush1.msra.mxu0 %v26
  %52 = vmatprep.subr.mxu0 0.0
  %53 = vmatpush1.msra.mxu0 %v27
  %54 = vmatprep.subr.mxu0 0.0
  %55 = vmatpush1.msra.mxu0 %v28
  %56 = vmatprep.subr.mxu0 0.0
  %57 = vmatpush1.msra.mxu0 %v29
  %58 = vmatprep.subr.mxu0 0.0
  %59 = vmatpush1.msra.mxu0 %v30
  %60 = vmatprep.subr.mxu0 0.0
  %61 = vmatpush1.msra.mxu0 %v31
  %62 = vmatprep.subr.mxu0 0.0
  %63 = vmatpush1.msra.mxu0 %v32
  %64 = vmatprep.subr.mxu0 0.0
  %65 = vmatpush1.msra.mxu0 %v33
  %66 = vmatprep.subr.mxu0 0.0
  %67 = vmatpush1.msra.mxu0 %v34
  %68 = vmatprep.subr.mxu0 0.0
  %69 = vmatpush1.msra.mxu0 %v35
  %70 = vmatprep.subr.mxu0 0.0
  %71 = vmatpush1.msra.mxu0 0.0
  %72 = vmatprep.subr.mxu0 0.0
  %73 = vmatpush1.msra.mxu0 0.0
  %74 = vmatprep.subr.mxu0 0.0
  %75 = vmatpush1.msra.mxu0 0.0
  %76 = vmatprep.subr.mxu0 0.0
  %77 = vmatpush1.msra.mxu0 0.0
  %78 = vmatprep.subr.mxu0 0.0
  %79 = vmatpush1.msra.mxu0 0.0
  %80 = vmatprep.subr.mxu0 0.0
  %81 = vmatpush1.msra.mxu0 0.0
  %82 = vmatprep.subr.mxu0 0.0
  %83 = vmatpush1.msra.mxu0 0.0
  %84 = vmatprep.subr.mxu0 0.0
  %85 = vmatpush1.msra.mxu0 0.0
  %86 = vmatprep.subr.mxu0 0.0
  %87 = vmatpush1.msra.mxu0 0.0
  %88 = vmatprep.subr.mxu0 0.0
  %89 = vmatpush1.msra.mxu0 0.0
  %90 = vmatprep.subr.mxu0 0.0
  %91 = vmatpush1.msra.mxu0 0.0
  %92 = vmatprep.subr.mxu0 0.0
  %93 = vmatpush1.msra.mxu0 0.0
  %94 = vmatprep.subr.mxu0 0.0
  %95 = vmatpush1.msra.mxu0 0.0
  %96 = vmatprep.subr.mxu0 0.0
  %97 = vmatpush1.msra.mxu0 0.0
  %98 = vmatprep.subr.mxu0 0.0
  %99 = vmatpush1.msra.mxu0 0.0
  %100 = vmatprep.subr.mxu0 0.0
  %101 = vmatpush1.msra.mxu0 0.0
  %102 = vmatprep.mubr.f32.mxu0 0.0
  %103 = vmatmul.mubr.f32.gmra.mrb[0].mxu0 %v36
  %v104 = vpop.f32.mrb[0].mxu0
  %v105 = vadd.f32 %v37, %v104
  %v106 = vpop.f32.mrb[0].mxu0
  %107 = vdwg.mxu0
  %v108 = vtanh.pop %v105
  %109 = vst [vmem:[#allocation2] sm:$0xff] %v108
  %110 = vst [vmem:[%s3] sm:$0xff] %v108
  %v111 = vld [vmem:[#allocation2] sm:$0xff]
  %s112 = scalar_lea.vmem %s1, 8
  %v113 = vld [vmem:[%s112] sm:$0xff]
  %114 = vmatprep.subr.mxu0 0.0
  %115 = vmatpush1.msra.mxu0 %v20
  %116 = vmatprep.subr.mxu0 0.0
  %117 = vmatpush1.msra.mxu0 %v21
  %118 = vmatprep.subr.mxu0 0.0
  %119 = vmatpush1.msra.mxu0 %v22
  %120 = vmatprep.subr.mxu0 0.0
  %121 = vmatpush1.msra.mxu0 %v23
  %122 = vmatprep.subr.mxu0 0.0
  %123 = vmatpush1.msra.mxu0 %v24
  %124 = vmatprep.subr.mxu0 0.0
  %125 = vmatpush1.msra.mxu0 %v25
  %126 = vmatprep.subr.mxu0 0.0
  %127 = vmatpush1.msra.mxu0 %v26
  %128 = vmatprep.subr.mxu0 0.0
  %129 = vmatpush1.msra.mxu0 %v27
  %130 = vmatprep.subr.mxu0 0.0
  %131 = vmatpush1.msra.mxu0 %v28
  %132 = vmatprep.subr.mxu0 0.0
  %133 = vmatpush1.msra.mxu0 %v29
  %134 = vmatprep.subr.mxu0 0.0
  %135 = vmatpush1.msra.mxu0 %v30
  %136 = vmatprep.subr.mxu0 0.0
  %137 = vmatpush1.msra.mxu0 %v31
  %138 = vmatprep.subr.mxu0 0.0
  %139 = vmatpush1.msra.mxu0 %v32
  %140 = vmatprep.subr.mxu0 0.0
  %141 = vmatpush1.msra.mxu0 %v33
  %142 = vmatprep.subr.mxu0 0.0
  %143 = vmatpush1.msra.mxu0 %v34
  %144 = vmatprep.subr.mxu0 0.0
  %145 = vmatpush1.msra.mxu0 %v35
  %146 = vmatprep.subr.mxu0 0.0
  %147 = vmatpush1.msra.mxu0 0.0
  %148 = vmatprep.subr.mxu0 0.0
  %149 = vmatpush1.msra.mxu0 0.0
  %150 = vmatprep.subr.mxu0 0.0
  %151 = vmatpush1.msra.mxu0 0.0
  %152 = vmatprep.subr.mxu0 0.0
  %153 = vmatpush1.msra.mxu0 0.0
  %154 = vmatprep.subr.mxu0 0.0
  %155 = vmatpush1.msra.mxu0 0.0
  %156 = vmatprep.subr.mxu0 0.0
  %157 = vmatpush1.msra.mxu0 0.0
  %158 = vmatprep.subr.mxu0 0.0
  %159 = vmatpush1.msra.mxu0 0.0
  %160 = vmatprep.subr.mxu0 0.0
  %161 = vmatpush1.msra.mxu0 0.0
  %162 = vmatprep.subr.mxu0 0.0
  %163 = vmatpush1.msra.mxu0 0.0
  %164 = vmatprep.subr.mxu0 0.0
  %165 = vmatpush1.msra.mxu0 0.0
  %166 = vmatprep.subr.mxu0 0.0
  %167 = vmatpush1.msra.mxu0 0.0
  %168 = vmatprep.subr.mxu0 0.0
  %169 = vmatpush1.msra.mxu0 0.0
  %170 = vmatprep.subr.mxu0 0.0
  %171 = vmatpush1.msra.mxu0 0.0
  %172 = vmatprep.subr.mxu0 0.0
  %173 = vmatpush1.msra.mxu0 0.0
  %174 = vmatprep.subr.mxu0 0.0
  %175 = vmatpush1.msra.mxu0 0.0
  %176 = vmatprep.subr.mxu0 0.0
  %177 = vmatpush1.msra.mxu0 0.0
  %178 = vmatprep.mubr.f32.mxu0 0.0
  %179 = vmatmul.mubr.f32.gmra.mrb[0].mxu0 %v111
  %v180 = vpop.f32.mrb[0].mxu0
  %v181 = vadd.f32 %v113, %v180
  %v182 = vpop.f32.mrb[0].mxu0
  %183 = vdwg.mxu0
  %v184 = vtanh.pop %v181
  %185 = vst [vmem:[#allocation2] sm:$0xff] %v184
  %s186 = scalar_lea.vmem %s3, 8
  %187 = vst [vmem:[%s186] sm:$0xff] %v184
  %v188 = vld [vmem:[#allocation2] sm:$0xff]
  %s189 = scalar_lea.vmem %s1, 16
  %v190 = vld [vmem:[%s189] sm:$0xff]
  %191 = vmatprep.subr.mxu0 0.0
  %192 = vmatpush1.msra.mxu0 %v20
  %193 = vmatprep.subr.mxu0 0.0
  %194 = vmatpush1.msra.mxu0 %v21
  %195 = vmatprep.subr.mxu0 0.0
  %196 = vmatpush1.msra.mxu0 %v22
  %197 = vmatprep.subr.mxu0 0.0
  %198 = vmatpush1.msra.mxu0 %v23
  %199 = vmatprep.subr.mxu0 0.0
  %200 = vmatpush1.msra.mxu0 %v24
  %201 = vmatprep.subr.mxu0 0.0
  %202 = vmatpush1.msra.mxu0 %v25
  %203 = vmatprep.subr.mxu0 0.0
  %204 = vmatpush1.msra.mxu0 %v26
  %205 = vmatprep.subr.mxu0 0.0
  %206 = vmatpush1.msra.mxu0 %v27
  %207 = vmatprep.subr.mxu0 0.0
  %208 = vmatpush1.msra.mxu0 %v28
  %209 = vmatprep.subr.mxu0 0.0
  %210 = vmatpush1.msra.mxu0 %v29
  %211 = vmatprep.subr.mxu0 0.0
  %212 = vmatpush1.msra.mxu0 %v30
  %213 = vmatprep.subr.mxu0 0.0
  %214 = vmatpush1.msra.mxu0 %v31
  %215 = vmatprep.subr.mxu0 0.0
  %216 = vmatpush1.msra.mxu0 %v32
  %217 = vmatprep.subr.mxu0 0.0
  %218 = vmatpush1.msra.mxu0 %v33
  %219 = vmatprep.subr.mxu0 0.0
  %220 = vmatpush1.msra.mxu0 %v34
  %221 = vmatprep.subr.mxu0 0.0
  %222 = vmatpush1.msra.mxu0 %v35
  %223 = vmatprep.subr.mxu0 0.0
  %224 = vmatpush1.msra.mxu0 0.0
  %225 = vmatprep.subr.mxu0 0.0
  %226 = vmatpush1.msra.mxu0 0.0
  %227 = vmatprep.subr.mxu0 0.0
  %228 = vmatpush1.msra.mxu0 0.0
  %229 = vmatprep.subr.mxu0 0.0
  %230 = vmatpush1.msra.mxu0 0.0
  %231 = vmatprep.subr.mxu0 0.0
  %232 = vmatpush1.msra.mxu0 0.0
  %233 = vmatprep.subr.mxu0 0.0
  %234 = vmatpush1.msra.mxu0 0.0
  %235 = vmatprep.subr.mxu0 0.0
  %236 = vmatpush1.msra.mxu0 0.0
  %237 = vmatprep.subr.mxu0 0.0
  %238 = vmatpush1.msra.mxu0 0.0
  %239 = vmatprep.subr.mxu0 0.0
  %240 = vmatpush1.msra.mxu0 0.0
  %241 = vmatprep.subr.mxu0 0.0
  %242 = vmatpush1.msra.mxu0 0.0
  %243 = vmatprep.subr.mxu0 0.0
  %244 = vmatpush1.msra.mxu0 0.0
  %245 = vmatprep.subr.mxu0 0.0
  %246 = vmatpush1.msra.mxu0 0.0
  %247 = vmatprep.subr.mxu0 0.0
  %248 = vmatpush1.msra.mxu0 0.0
  %249 = vmatprep.subr.mxu0 0.0
  %250 = vmatpush1.msra.mxu0 0.0
  %251 = vmatprep.subr.mxu0 0.0
  %252 = vmatpush1.msra.mxu0 0.0
  %253 = vmatprep.subr.mxu0 0.0
  %254 = vmatpush1.msra.mxu0 0.0
  %255 = vmatprep.mubr.f32.mxu0 0.0
  %256 = vmatmul.mubr.f32.gmra.mrb[0].mxu0 %v188
  %v257 = vpop.f32.mrb[0].mxu0
  %v258 = vadd.f32 %v190, %v257
  %v259 = vpop.f32.mrb[0].mxu0
  %260 = vdwg.mxu0
  %v261 = vtanh.pop %v258
  %262 = vst [vmem:[#allocation2] sm:$0xff] %v261
  %s263 = scalar_lea.vmem %s3, 16
  %264 = vst [vmem:[%s263] sm:$0xff] %v261
  %v265 = vld [vmem:[#allocation2] sm:$0xff]
  %s266 = scalar_lea.vmem %s1, 24
  %v267 = vld [vmem:[%s266] sm:$0xff]
  %268 = vmatprep.subr.mxu0 0.0
  %269 = vmatpush1.msra.mxu0 %v20
  %270 = vmatprep.subr.mxu0 0.0
  %271 = vmatpush1.msra.mxu0 %v21
  %272 = vmatprep.subr.mxu0 0.0
  %273 = vmatpush1.msra.mxu0 %v22
  %274 = vmatprep.subr.mxu0 0.0
  %275 = vmatpush1.msra.mxu0 %v23
  %276 = vmatprep.subr.mxu0 0.0
  %277 = vmatpush1.msra.mxu0 %v24
  %278 = vmatprep.subr.mxu0 0.0
  %279 = vmatpush1.msra.mxu0 %v25
  %280 = vmatprep.subr.mxu0 0.0
  %281 = vmatpush1.msra.mxu0 %v26
  %282 = vmatprep.subr.mxu0 0.0
  %283 = vmatpush1.msra.mxu0 %v27
  %284 = vmatprep.subr.mxu0 0.0
  %285 = vmatpush1.msra.mxu0 %v28
  %286 = vmatprep.subr.mxu0 0.0
  %287 = vmatpush1.msra.mxu0 %v29
  %288 = vmatprep.subr.mxu0 0.0
  %289 = vmatpush1.msra.mxu0 %v30
  %290 = vmatprep.subr.mxu0 0.0
  %291 = vmatpush1.msra.mxu0 %v31
  %292 = vmatprep.subr.mxu0 0.0
  %293 = vmatpush1.msra.mxu0 %v32
  %294 = vmatprep.subr.mxu0 0.0
  %295 = vmatpush1.msra.mxu0 %v33
  %296 = vmatprep.subr.mxu0 0.0
  %297 = vmatpush1.msra.mxu0 %v34
  %298 = vmatprep.subr.mxu0 0.0
  %299 = vmatpush1.msra.mxu0 %v35
  %300 = vmatprep.subr.mxu0 0.0
  %301 = vmatpush1.msra.mxu0 0.0
  %302 = vmatprep.subr.mxu0 0.0
  %303 = vmatpush1.msra.mxu0 0.0
  %304 = vmatprep.subr.mxu0 0.0
  %305 = vmatpush1.msra.mxu0 0.0
  %306 = vmatprep.subr.mxu0 0.0
  %307 = vmatpush1.msra.mxu0 0.0
  %308 = vmatprep.subr.mxu0 0.0
  %309 = vmatpush1.msra.mxu0 0.0
  %310 = vmatprep.subr.mxu0 0.0
  %311 = vmatpush1.msra.mxu0 0.0
  %312 = vmatprep.subr.mxu0 0.0
  %313 = vmatpush1.msra.mxu0 0.0
  %314 = vmatprep.subr.mxu0 0.0
  %315 = vmatpush1.msra.mxu0 0.0
  %316 = vmatprep.subr.mxu0 0.0
  %317 = vmatpush1.msra.mxu0 0.0
  %318 = vmatprep.subr.mxu0 0.0
  %319 = vmatpush1.msra.mxu0 0.0
  %320 = vmatprep.subr.mxu0 0.0
  %321 = vmatpush1.msra.mxu0 0.0
  %322 = vmatprep.subr.mxu0 0.0
  %323 = vmatpush1.msra.mxu0 0.0
  %324 = vmatprep.subr.mxu0 0.0
  %325 = vmatpush1.msra.mxu0 0.0
  %326 = vmatprep.subr.mxu0 0.0
  %327 = vmatpush1.msra.mxu0 0.0
  %328 = vmatprep.subr.mxu0 0.0
  %329 = vmatpush1.msra.mxu0 0.0
  %330 = vmatprep.subr.mxu0 0.0
  %331 = vmatpush1.msra.mxu0 0.0
  %332 = vmatprep.mubr.f32.mxu0 0.0
  %333 = vmatmul.mubr.f32.gmra.mrb[0].mxu0 %v265
  %v334 = vpop.f32.mrb[0].mxu0
  %v335 = vadd.f32 %v267, %v334
  %v336 = vpop.f32.mrb[0].mxu0
  %337 = vdwg.mxu0
  %v338 = vtanh.pop %v335
  %339 = vst [vmem:[#allocation2] sm:$0xff] %v338
  %s340 = scalar_lea.vmem %s3, 24
  %341 = vst [vmem:[%s340] sm:$0xff] %v338
  %v342 = vld [vmem:[#allocation2] sm:$0xff]
  %s343 = scalar_lea.vmem %s1, 32
  %v344 = vld [vmem:[%s343] sm:$0xff]
  %345 = vmatprep.subr.mxu0 0.0
  %346 = vmatpush1.msra.mxu0 %v20
  %347 = vmatprep.subr.mxu0 0.0
  %348 = vmatpush1.msra.mxu0 %v21
  %349 = vmatprep.subr.mxu0 0.0
  %350 = vmatpush1.msra.mxu0 %v22
  %351 = vmatprep.subr.mxu0 0.0
  %352 = vmatpush1.msra.mxu0 %v23
  %353 = vmatprep.subr.mxu0 0.0
  %354 = vmatpush1.msra.mxu0 %v24
  %355 = vmatprep.subr.mxu0 0.0
  %356 = vmatpush1.msra.mxu0 %v25
  %357 = vmatprep.subr.mxu0 0.0
  %358 = vmatpush1.msra.mxu0 %v26
  %359 = vmatprep.subr.mxu0 0.0
  %360 = vmatpush1.msra.mxu0 %v27
  %361 = vmatprep.subr.mxu0 0.0
  %362 = vmatpush1.msra.mxu0 %v28
  %363 = vmatprep.subr.mxu0 0.0
  %364 = vmatpush1.msra.mxu0 %v29
  %365 = vmatprep.subr.mxu0 0.0
  %366 = vmatpush1.msra.mxu0 %v30
  %367 = vmatprep.subr.mxu0 0.0
  %368 = vmatpush1.msra.mxu0 %v31
  %369 = vmatprep.subr.mxu0 0.0
  %370 = vmatpush1.msra.mxu0 %v32
  %371 = vmatprep.subr.mxu0 0.0
  %372 = vmatpush1.msra.mxu0 %v33
  %373 = vmatprep.subr.mxu0 0.0
  %374 = vmatpush1.msra.mxu0 %v34
  %375 = vmatprep.subr.mxu0 0.0
  %376 = vmatpush1.msra.mxu0 %v35
  %377 = vmatprep.subr.mxu0 0.0
  %378 = vmatpush1.msra.mxu0 0.0
  %379 = vmatprep.subr.mxu0 0.0
  %380 = vmatpush1.msra.mxu0 0.0
  %381 = vmatprep.subr.mxu0 0.0
  %382 = vmatpush1.msra.mxu0 0.0
  %383 = vmatprep.subr.mxu0 0.0
  %384 = vmatpush1.msra.mxu0 0.0
  %385 = vmatprep.subr.mxu0 0.0
  %386 = vmatpush1.msra.mxu0 0.0
  %387 = vmatprep.subr.mxu0 0.0
  %388 = vmatpush1.msra.mxu0 0.0
  %389 = vmatprep.subr.mxu0 0.0
  %390 = vmatpush1.msra.mxu0 0.0
  %391 = vmatprep.subr.mxu0 0.0
  %392 = vmatpush1.msra.mxu0 0.0
  %393 = vmatprep.subr.mxu0 0.0
  %394 = vmatpush1.msra.mxu0 0.0
  %395 = vmatprep.subr.mxu0 0.0
  %396 = vmatpush1.msra.mxu0 0.0
  %397 = vmatprep.subr.mxu0 0.0
  %398 = vmatpush1.msra.mxu0 0.0
  %399 = vmatprep.subr.mxu0 0.0
  %400 = vmatpush1.msra.mxu0 0.0
  %401 = vmatprep.subr.mxu0 0.0
  %402 = vmatpush1.msra.mxu0 0.0
  %403 = vmatprep.subr.mxu0 0.0
  %404 = vmatpush1.msra.mxu0 0.0
  %405 = vmatprep.subr.mxu0 0.0
  %406 = vmatpush1.msra.mxu0 0.0
  %407 = vmatprep.subr.mxu0 0.0
  %408 = vmatpush1.msra.mxu0 0.0
  %409 = vmatprep.mubr.f32.mxu0 0.0
  %410 = vmatmul.mubr.f32.gmra.mrb[0].mxu0 %v342
  %v411 = vpop.f32.mrb[0].mxu0
  %v412 = vadd.f32 %v344, %v411
  %v413 = vpop.f32.mrb[0].mxu0
  %414 = vdwg.mxu0
  %v415 = vtanh.pop %v412
  %416 = vst [vmem:[#allocation2] sm:$0xff] %v415
  %s417 = scalar_lea.vmem %s3, 32
  %418 = vst [vmem:[%s417] sm:$0xff] %v415
  %v419 = vld [vmem:[#allocation2] sm:$0xff]
  %s420 = scalar_lea.vmem %s1, 40
  %v421 = vld [vmem:[%s420] sm:$0xff]
  %422 = vmatprep.subr.mxu0 0.0
  %423 = vmatpush1.msra.mxu0 %v20
  %424 = vmatprep.subr.mxu0 0.0
  %425 = vmatpush1.msra.mxu0 %v21
  %426 = vmatprep.subr.mxu0 0.0
  %427 = vmatpush1.msra.mxu0 %v22
  %428 = vmatprep.subr.mxu0 0.0
  %429 = vmatpush1.msra.mxu0 %v23
  %430 = vmatprep.subr.mxu0 0.0
  %431 = vmatpush1.msra.mxu0 %v24
  %432 = vmatprep.subr.mxu0 0.0
  %433 = vmatpush1.msra.mxu0 %v25
  %434 = vmatprep.subr.mxu0 0.0
  %435 = vmatpush1.msra.mxu0 %v26
  %436 = vmatprep.subr.mxu0 0.0
  %437 = vmatpush1.msra.mxu0 %v27
  %438 = vmatprep.subr.mxu0 0.0
  %439 = vmatpush1.msra.mxu0 %v28
  %440 = vmatprep.subr.mxu0 0.0
  %441 = vmatpush1.msra.mxu0 %v29
  %442 = vmatprep.subr.mxu0 0.0
  %443 = vmatpush1.msra.mxu0 %v30
  %444 = vmatprep.subr.mxu0 0.0
  %445 = vmatpush1.msra.mxu0 %v31
  %446 = vmatprep.subr.mxu0 0.0
  %447 = vmatpush1.msra.mxu0 %v32
  %448 = vmatprep.subr.mxu0 0.0
  %449 = vmatpush1.msra.mxu0 %v33
  %450 = vmatprep.subr.mxu0 0.0
  %451 = vmatpush1.msra.mxu0 %v34
  %452 = vmatprep.subr.mxu0 0.0
  %453 = vmatpush1.msra.mxu0 %v35
  %454 = vmatprep.subr.mxu0 0.0
  %455 = vmatpush1.msra.mxu0 0.0
  %456 = vmatprep.subr.mxu0 0.0
  %457 = vmatpush1.msra.mxu0 0.0
  %458 = vmatprep.subr.mxu0 0.0
  %459 = vmatpush1.msra.mxu0 0.0
  %460 = vmatprep.subr.mxu0 0.0
  %461 = vmatpush1.msra.mxu0 0.0
  %462 = vmatprep.subr.mxu0 0.0
  %463 = vmatpush1.msra.mxu0 0.0
  %464 = vmatprep.subr.mxu0 0.0
  %465 = vmatpush1.msra.mxu0 0.0
  %466 = vmatprep.subr.mxu0 0.0
  %467 = vmatpush1.msra.mxu0 0.0
  %468 = vmatprep.subr.mxu0 0.0
  %469 = vmatpush1.msra.mxu0 0.0
  %470 = vmatprep.subr.mxu0 0.0
  %471 = vmatpush1.msra.mxu0 0.0
  %472 = vmatprep.subr.mxu0 0.0
  %473 = vmatpush1.msra.mxu0 0.0
  %474 = vmatprep.subr.mxu0 0.0
  %475 = vmatpush1.msra.mxu0 0.0
  %476 = vmatprep.subr.mxu0 0.0
  %477 = vmatpush1.msra.mxu0 0.0
  %478 = vmatprep.subr.mxu0 0.0
  %479 = vmatpush1.msra.mxu0 0.0
  %480 = vmatprep.subr.mxu0 0.0
  %481 = vmatpush1.msra.mxu0 0.0
  %482 = vmatprep.subr.mxu0 0.0
  %483 = vmatpush1.msra.mxu0 0.0
  %484 = vmatprep.subr.mxu0 0.0
  %485 = vmatpush1.msra.mxu0 0.0
  %486 = vmatprep.mubr.f32.mxu0 0.0
  %487 = vmatmul.mubr.f32.gmra.mrb[0].mxu0 %v419
  %v488 = vpop.f32.mrb[0].mxu0
  %v489 = vadd.f32 %v421, %v488
  %v490 = vpop.f32.mrb[0].mxu0
  %491 = vdwg.mxu0
  %v492 = vtanh.pop %v489
  %493 = vst [vmem:[#allocation2] sm:$0xff] %v492
  %s494 = scalar_lea.vmem %s3, 40
  %495 = vst [vmem:[%s494] sm:$0xff] %v492
  %v496 = vld [vmem:[#allocation2] sm:$0xff]
  %s497 = scalar_lea.vmem %s1, 48
  %v498 = vld [vmem:[%s497] sm:$0xff]
  %499 = vmatprep.subr.mxu0 0.0
  %500 = vmatpush1.msra.mxu0 %v20
  %501 = vmatprep.subr.mxu0 0.0
  %502 = vmatpush1.msra.mxu0 %v21
  %503 = vmatprep.subr.mxu0 0.0
  %504 = vmatpush1.msra.mxu0 %v22
  %505 = vmatprep.subr.mxu0 0.0
  %506 = vmatpush1.msra.mxu0 %v23
  %507 = vmatprep.subr.mxu0 0.0
  %508 = vmatpush1.msra.mxu0 %v24
  %509 = vmatprep.subr.mxu0 0.0
  %510 = vmatpush1.msra.mxu0 %v25
  %511 = vmatprep.subr.mxu0 0.0
  %512 = vmatpush1.msra.mxu0 %v26
  %513 = vmatprep.subr.mxu0 0.0
  %514 = vmatpush1.msra.mxu0 %v27
  %515 = vmatprep.subr.mxu0 0.0
  %516 = vmatpush1.msra.mxu0 %v28
  %517 = vmatprep.subr.mxu0 0.0
  %518 = vmatpush1.msra.mxu0 %v29
  %519 = vmatprep.subr.mxu0 0.0
  %520 = vmatpush1.msra.mxu0 %v30
  %521 = vmatprep.subr.mxu0 0.0
  %522 = vmatpush1.msra.mxu0 %v31
  %523 = vmatprep.subr.mxu0 0.0
  %524 = vmatpush1.msra.mxu0 %v32
  %525 = vmatprep.subr.mxu0 0.0
  %526 = vmatpush1.msra.mxu0 %v33
  %527 = vmatprep.subr.mxu0 0.0
  %528 = vmatpush1.msra.mxu0 %v34
  %529 = vmatprep.subr.mxu0 0.0
  %530 = vmatpush1.msra.mxu0 %v35
  %531 = vmatprep.subr.mxu0 0.0
  %532 = vmatpush1.msra.mxu0 0.0
  %533 = vmatprep.subr.mxu0 0.0
  %534 = vmatpush1.msra.mxu0 0.0
  %535 = vmatprep.subr.mxu0 0.0
  %536 = vmatpush1.msra.mxu0 0.0
  %537 = vmatprep.subr.mxu0 0.0
  %538 = vmatpush1.msra.mxu0 0.0
  %539 = vmatprep.subr.mxu0 0.0
  %540 = vmatpush1.msra.mxu0 0.0
  %541 = vmatprep.subr.mxu0 0.0
  %542 = vmatpush1.msra.mxu0 0.0
  %543 = vmatprep.subr.mxu0 0.0
  %544 = vmatpush1.msra.mxu0 0.0
  %545 = vmatprep.subr.mxu0 0.0
  %546 = vmatpush1.msra.mxu0 0.0
  %547 = vmatprep.subr.mxu0 0.0
  %548 = vmatpush1.msra.mxu0 0.0
  %549 = vmatprep.subr.mxu0 0.0
  %550 = vmatpush1.msra.mxu0 0.0
  %551 = vmatprep.subr.mxu0 0.0
  %552 = vmatpush1.msra.mxu0 0.0
  %553 = vmatprep.subr.mxu0 0.0
  %554 = vmatpush1.msra.mxu0 0.0
  %555 = vmatprep.subr.mxu0 0.0
  %556 = vmatpush1.msra.mxu0 0.0
  %557 = vmatprep.subr.mxu0 0.0
  %558 = vmatpush1.msra.mxu0 0.0
  %559 = vmatprep.subr.mxu0 0.0
  %560 = vmatpush1.msra.mxu0 0.0
  %561 = vmatprep.subr.mxu0 0.0
  %562 = vmatpush1.msra.mxu0 0.0
  %563 = vmatprep.mubr.f32.mxu0 0.0
  %564 = vmatmul.mubr.f32.gmra.mrb[0].mxu0 %v496
  %v565 = vpop.f32.mrb[0].mxu0
  %v566 = vadd.f32 %v498, %v565
  %v567 = vpop.f32.mrb[0].mxu0
  %568 = vdwg.mxu0
  %v569 = vtanh.pop %v566
  %570 = vst [vmem:[#allocation2] sm:$0xff] %v569
  %s571 = scalar_lea.vmem %s3, 48
  %572 = vst [vmem:[%s571] sm:$0xff] %v569
  %v573 = vld [vmem:[#allocation2] sm:$0xff]
  %s574 = scalar_lea.vmem %s1, 56
  %v575 = vld [vmem:[%s574] sm:$0xff]
  %576 = vmatprep.subr.mxu0 0.0
  %577 = vmatpush1.msra.mxu0 %v20
  %578 = vmatprep.subr.mxu0 0.0
  %579 = vmatpush1.msra.mxu0 %v21
  %580 = vmatprep.subr.mxu0 0.0
  %581 = vmatpush1.msra.mxu0 %v22
  %582 = vmatprep.subr.mxu0 0.0
  %583 = vmatpush1.msra.mxu0 %v23
  %584 = vmatprep.subr.mxu0 0.0
  %585 = vmatpush1.msra.mxu0 %v24
  %586 = vmatprep.subr.mxu0 0.0
  %587 = vmatpush1.msra.mxu0 %v25
  %588 = vmatprep.subr.mxu0 0.0
  %589 = vmatpush1.msra.mxu0 %v26
  %590 = vmatprep.subr.mxu0 0.0
  %591 = vmatpush1.msra.mxu0 %v27
  %592 = vmatprep.subr.mxu0 0.0
  %593 = vmatpush1.msra.mxu0 %v28
  %594 = vmatprep.subr.mxu0 0.0
  %595 = vmatpush1.msra.mxu0 %v29
  %596 = vmatprep.subr.mxu0 0.0
  %597 = vmatpush1.msra.mxu0 %v30
  %598 = vmatprep.subr.mxu0 0.0
  %599 = vmatpush1.msra.mxu0 %v31
  %600 = vmatprep.subr.mxu0 0.0
  %601 = vmatpush1.msra.mxu0 %v32
  %602 = vmatprep.subr.mxu0 0.0
  %603 = vmatpush1.msra.mxu0 %v33
  %604 = vmatprep.subr.mxu0 0.0
  %605 = vmatpush1.msra.mxu0 %v34
  %606 = vmatprep.subr.mxu0 0.0
  %607 = vmatpush1.msra.mxu0 %v35
  %608 = vmatprep.subr.mxu0 0.0
  %609 = vmatpush1.msra.mxu0 0.0
  %610 = vmatprep.subr.mxu0 0.0
  %611 = vmatpush1.msra.mxu0 0.0
  %612 = vmatprep.subr.mxu0 0.0
  %613 = vmatpush1.msra.mxu0 0.0
  %614 = vmatprep.subr.mxu0 0.0
  %615 = vmatpush1.msra.mxu0 0.0
  %616 = vmatprep.subr.mxu0 0.0
  %617 = vmatpush1.msra.mxu0 0.0
  %618 = vmatprep.subr.mxu0 0.0
  %619 = vmatpush1.msra.mxu0 0.0
  %620 = vmatprep.subr.mxu0 0.0
  %621 = vmatpush1.msra.mxu0 0.0
  %622 = vmatprep.subr.mxu0 0.0
  %623 = vmatpush1.msra.mxu0 0.0
  %624 = vmatprep.subr.mxu0 0.0
  %625 = vmatpush1.msra.mxu0 0.0
  %626 = vmatprep.subr.mxu0 0.0
  %627 = vmatpush1.msra.mxu0 0.0
  %628 = vmatprep.subr.mxu0 0.0
  %629 = vmatpush1.msra.mxu0 0.0
  %630 = vmatprep.subr.mxu0 0.0
  %631 = vmatpush1.msra.mxu0 0.0
  %632 = vmatprep.subr.mxu0 0.0
  %633 = vmatpush1.msra.mxu0 0.0
  %634 = vmatprep.subr.mxu0 0.0
  %635 = vmatpush1.msra.mxu0 0.0
  %636 = vmatprep.subr.mxu0 0.0
  %637 = vmatpush1.msra.mxu0 0.0
  %638 = vmatprep.subr.mxu0 0.0
  %639 = vmatpush1.msra.mxu0 0.0
  %640 = vmatprep.mubr.f32.mxu0 0.0
  %641 = vmatmul.mubr.f32.gmra.mrb[0].mxu0 %v573
  %v642 = vpop.f32.mrb[0].mxu0
  %v643 = vadd.f32 %v575, %v642
  %v644 = vpop.f32.mrb[0].mxu0
  %645 = vdwg.mxu0
  %v646 = vtanh.pop %v643
  %647 = vst [vmem:[#allocation2] sm:$0xff] %v646
  %s648 = scalar_lea.vmem %s3, 56
  %649 = vst [vmem:[%s648] sm:$0xff] %v646
  // Predicated region
  $region18: #{rnn_forward_sequence.1} parent=0 // pred_check
    _
  $region19: #{rnn_forward_sequence.1} parent=0 // pred_check_branch
    %651 = sbr.rel (0) target = $region21
  $region20: #{rnn_forward_sequence.1} parent=0 // pred_region
    _
  $region21: #{rnn_forward_sequence.1} parent=0 // pred_fallthru
    _
  // Predicated region
  $region22: #{rnn_forward_sequence.1} parent=0 // pred_check
    _
  $region23: #{rnn_forward_sequence.1} parent=0 // pred_check_branch
    %653 = sbr.rel (0) target = $region25
  $region24: #{rnn_forward_sequence.1} parent=0 // pred_region
    _
  $region25: #{rnn_forward_sequence.1} parent=0 // pred_fallthru
    _

</llo_original>
